<compile_context>
chip_gen: v7x
topology: tpu7x:2x2x1
jax: 0.10.0
libtpu: 0.0.40
codegen_flags: <defaults>
</compile_context>

<pallas_src>
import jax
import jax.numpy as jnp
from jax.experimental import pallas as pl
from jax.experimental.pallas import tpu as pltpu


def _round_up(n, m):
    return ((n + m - 1) // m) * m


def _binary_classification_kernel(w_ref, b_ref, x_ref, o_ref):
    """w_ref: SMEM (2,) f32; b_ref: SMEM (1,) f32.

    x_ref: VMEM (TR, 128) f32 -- flat (B, 2) input viewed as 128-lane rows, so
           lanes alternate [x0, x1, x0, x1, ...] (64 batch elements per row).
    o_ref: VMEM (TR, 128) f32 -- sigmoid(z) valid on even lanes; odd lanes are
           don't-care and are dropped by the wrapper's column slice.
    """
    x = x_ref[...]                                   # (TR, 128), interleaved
    w0 = w_ref[0]                                    # SMEM scalar reads
    w1 = w_ref[1]
    b = b_ref[0]

    # Rotate left by one lane (shift = 127 ≡ -1 mod 128) on the otherwise-idle
    # XLU so every even lane also sees its x1 partner.
    xn = pltpu.roll(x, x.shape[-1] - 1, 1)

    # VPU-only FMA: even lanes hold z = x0*w0 + x1*w1 + b exactly in f32.
    z = x * w0 + xn * w1 + b

    # Sigmoid via tanh: one EUP push per vreg, no divide chain, no exp overflow.
    o_ref[...] = 0.5 * jnp.tanh(0.5 * z) + 0.5


def binary_classification_forward(x, weight, bias, *, block_rows=4096):
    """x: (B, 2) f32, weight: (1, 2) f32 (PyTorch layout), bias: (1,) f32 -> (B, 1) f32."""
    B, in_features = x.shape
    assert in_features == 2 and weight.shape == (1, 2) and bias.shape == (1,)

    x = x.astype(jnp.float32)

    # Row-major flat view (B, 2) -> (R, 128): free when B % 64 == 0; otherwise
    # pad only the ragged tail (never to a whole tile).
    Bp = _round_up(B, 64)
    if Bp != B:
        x = jnp.pad(x, ((0, Bp - B), (0, 0)))
    R = (Bp * 2) // 128
    xv = x.reshape(R, 128)

    # Dense (TR, 128) blocks. Default 4096 rows = 2 MiB input + 2 MiB output
    # per grid step (8 MiB double-buffered -> fits v5e/v6e/v7x scoped VMEM).
    block_rows = max(8, (int(block_rows) // 8) * 8)
    if R <= block_rows:
        tr = R                    # single block == full array extent (legal)
    else:
        tr = block_rows           # multiple of 8; boundary block is masked
    grid = (pl.cdiv(R, tr),)

    w = weight.reshape(2).astype(jnp.float32)        # params as SMEM scalars
    b = bias.reshape(1).astype(jnp.float32)

    out = pl.pallas_call(
        _binary_classification_kernel,
        out_shape=jax.ShapeDtypeStruct((R, 128), jnp.float32),
        grid=grid,
        in_specs=[
            pl.BlockSpec(memory_space=pltpu.MemorySpace.SMEM),   # weight (2,)
            pl.BlockSpec(memory_space=pltpu.MemorySpace.SMEM),   # bias (1,)
            pl.BlockSpec((tr, 128), lambda i: (i, 0)),           # x rows
        ],
        out_specs=pl.BlockSpec((tr, 128), lambda i: (i, 0)),     # lane-dense out
        compiler_params=pltpu.CompilerParams(
            dimension_semantics=("parallel",),
        ),
    )(w, b, xv)

    # (R, 128) -> (Bp, 2) is layout-only; even lanes == column 0 hold sigmoid(z).
    # The column slice is the single remaining wrapper-side copy.
    return out.reshape(Bp, 2)[:B, 0:1]


if __name__ == "__main__":
    key = jax.random.PRNGKey(0)
    kx, kw, kb = jax.random.split(key, 3)

    B, IN, OUT = 8, 2, 1
    x = jax.random.normal(kx, (B, IN), dtype=jnp.float32)

    # Deterministic params mimicking nn.Linear default init: U(-1/sqrt(in), 1/sqrt(in)).
    bound = 1.0 / jnp.sqrt(jnp.float32(IN))
    weight = jax.random.uniform(kw, (OUT, IN), dtype=jnp.float32, minval=-bound, maxval=bound)
    bias = jax.random.uniform(kb, (OUT,), dtype=jnp.float32, minval=-bound, maxval=bound)

    def reference(xr):
        z = xr[:, 0:1] * weight[0, 0] + xr[:, 1:2] * weight[0, 1] + bias[0]
        return jax.nn.sigmoid(z)

    # Small demo batch.
    out = jax.block_until_ready(binary_classification_forward(x, weight, bias))
    assert out.shape == (B, OUT)
    assert jnp.allclose(out, reference(x), atol=1e-6, rtol=1e-5)

    # Ragged batch (300 -> padded to 320), single block.
    x2 = jax.random.normal(jax.random.PRNGKey(1), (300, IN), dtype=jnp.float32)
    out2 = jax.block_until_ready(binary_classification_forward(x2, weight, bias))
    assert out2.shape == (300, OUT)
    assert jnp.allclose(out2, reference(x2), atol=1e-6, rtol=1e-5)

    # Multi-block grid with a masked boundary block (R=20 rows, TR=8 -> grid=3),
    # no input padding (1280 % 64 == 0).
    x3 = jax.random.normal(jax.random.PRNGKey(2), (1280, IN), dtype=jnp.float32)
    out3 = jax.block_until_ready(
        binary_classification_forward(x3, weight, bias, block_rows=8))
    assert out3.shape == (1280, OUT)
    assert jnp.allclose(out3, reference(x3), atol=1e-6, rtol=1e-5)

    print("KERNEL_OK")
</pallas_src>

<mosaic_0001>
module attributes {stable_mosaic.version = 11 : i64} {
  func.func @_binary_classification_kernel(%arg0: i32, %arg1: memref<2xf32, #tpu.memory_space<smem>>, %arg2: memref<1xf32, #tpu.memory_space<smem>>, %arg3: memref<1x128xf32, #tpu.memory_space<vmem>>, %arg4: memref<1x128xf32, #tpu.memory_space<vmem>>) attributes {dimension_semantics = [#tpu.dimension_semantics<parallel>], iteration_bounds = array<i64: 1>, scalar_prefetch = 0 : i64, scratch_operands = 0 : i64, tpu.core_type = #tpu.core_type<tc>, window_params = [{transform_indices = @transform_0, window_bounds = array<i64: 2>}, {transform_indices = @transform_1, window_bounds = array<i64: 1>}, {transform_indices = @transform_2, window_bounds = array<i64: 1, 128>}, {transform_indices = @transform_3, window_bounds = array<i64: 1, 128>}]} {
    %c0 = arith.constant 0 : index
    %c0_0 = arith.constant 0 : index
    %0 = vector.load %arg3[%c0, %c0_0] : memref<1x128xf32, #tpu.memory_space<vmem>>, vector<1x128xf32>
    %c0_1 = arith.constant 0 : index
    %1 = memref.load %arg1[%c0_1] : memref<2xf32, #tpu.memory_space<smem>>
    %c1 = arith.constant 1 : index
    %2 = memref.load %arg1[%c1] : memref<2xf32, #tpu.memory_space<smem>>
    %c0_2 = arith.constant 0 : index
    %3 = memref.load %arg2[%c0_2] : memref<1xf32, #tpu.memory_space<smem>>
    %c127_i32 = arith.constant 127 : i32
    %4 = tpu.dynamic_rotate %0 by %c127_i32 dim 1 : vector<1x128xf32>, i32 -> vector<1x128xf32>
    %5 = vector.broadcast %1 : f32 to vector<1x128xf32>
    %6 = arith.mulf %0, %5 : vector<1x128xf32>
    %7 = vector.broadcast %2 : f32 to vector<1x128xf32>
    %8 = arith.mulf %4, %7 : vector<1x128xf32>
    %9 = arith.addf %6, %8 : vector<1x128xf32>
    %10 = vector.broadcast %3 : f32 to vector<1x128xf32>
    %11 = arith.addf %9, %10 : vector<1x128xf32>
    %cst = arith.constant 5.000000e-01 : f32
    %12 = vector.broadcast %cst : f32 to vector<1x128xf32>
    %13 = arith.mulf %12, %11 : vector<1x128xf32>
    %14 = math.tanh %13 : vector<1x128xf32>
    %cst_3 = arith.constant 5.000000e-01 : f32
    %15 = vector.broadcast %cst_3 : f32 to vector<1x128xf32>
    %16 = arith.mulf %15, %14 : vector<1x128xf32>
    %cst_4 = arith.constant 5.000000e-01 : f32
    %17 = vector.broadcast %cst_4 : f32 to vector<1x128xf32>
    %18 = arith.addf %16, %17 : vector<1x128xf32>
    %c0_5 = arith.constant 0 : index
    %c0_6 = arith.constant 0 : index
    %19 = vector.load %arg4[%c0_5, %c0_6] : memref<1x128xf32, #tpu.memory_space<vmem>>, vector<1x128xf32>
    tpu.vector_store %arg4[%c0_5, %c0_6], %18 {strides = array<i32>} : memref<1x128xf32, #tpu.memory_space<vmem>>, vector<1x128xf32>,
    return
  }
  func.func @transform_0(%arg0: i32) -> i32 {
    %c0_i32 = arith.constant 0 : i32
    %c0_i32_0 = arith.constant 0 : i32
    return %c0_i32 : i32
  }
  func.func @transform_1(%arg0: i32) -> i32 {
    %c0_i32 = arith.constant 0 : i32
    %c0_i32_0 = arith.constant 0 : i32
    return %c0_i32 : i32
  }
  func.func @transform_2(%arg0: i32) -> (i32, i32) {
    %c0_i32 = arith.constant 0 : i32
    %c0_i32_0 = arith.constant 0 : i32
    return %arg0, %c0_i32 : i32, i32
  }
  func.func @transform_3(%arg0: i32) -> (i32, i32) {
    %c0_i32 = arith.constant 0 : i32
    %c0_i32_0 = arith.constant 0 : i32
    return %arg0, %c0_i32 : i32, i32
  }
}

</mosaic_0001>

<llo_original>
// kernel: tpu_custom_call.1
$region0: #{tpu_custom_call.1}
  #allocation0 [shape = 'u32[]', space=smem, size = 0x4, offset = 0x4, fixed_abs, tag = 'smem constant byte address 0x4 - core index']
  #allocation1 [shape = 'u32[144,128]{1,0:T(1,128)}', space=vmem, size = 0x12000, scoped, tag = 'internal scratch']
  #allocation2 [shape = 'f32[1]{0:T(128)S(6)}', space=smem, size = 0x200, scoped, tag = 'scoped memory for tpu_custom_call.1']
  %s0 = inlined_call_operand.vmem [shape: f32[2], index: 0, kind: input, shape index: {}]
  %s1 = inlined_call_operand.<no memory space> [shape: f32[1], index: 1, kind: input, shape index: {}]
  %s2 = inlined_call_operand.vmem [shape: f32[1,128], index: 2, kind: input, shape index: {}]
  %s3 = inlined_call_operand.hbm [shape: f32[1,128], index: 3, kind: output, shape index: {}]
  %s4 = sld [smem:[#allocation0]]
  $region26: #{tpu_custom_call.1} parent=0
    _
  %s6 = ssub.s32 1, %s4
  %s7 = scalar_select 0, %s6, %s4
  %8 = sst [smem:[#allocation2]] %s1
  $region1: #{tpu_custom_call.1} parent=0
    #allocation3 [shape = 'u8[512]{0}', space=smem, size = 0x200, scoped, tag = 'input window, operand 0, single buffered']
    #allocation4 [shape = 's32[1]{0}', space=sflag, size = 0x4, scoped, tag = 'scoped memory for tpu_custom_call.1']
    #allocation5 [shape = 's32[1]{0}', space=sflag, size = 0x4, scoped, tag = 'scoped memory for tpu_custom_call.1']
    #allocation6 [shape = 'u8[512]{0}', space=vmem, size = 0x400, scoped, tag = 'output window, operand 0, single buffered']
    %9 = vsyncpa [#allocation5], 0
    %10 = vsyncpa [#allocation4], 0
    // Predicated region
    $region2: #{tpu_custom_call.1} parent=1 // pred_check
      _
    $region3: #{tpu_custom_call.1} parent=1 // pred_check_branch
      %12 = sbr.rel (0) target = $region5
    $region4: #{tpu_custom_call.1} parent=1 // pred_region
      %s14 = ssub.s32 16, 16
      %15 = vsyncadd [#allocation5], %s14
      %s17 = sshll.u32 %s0, 4
      %s18 = int_to_ptr.vmem [resolvable:$true] %s17
      %20 = dma.vmem_to_smem %s18, 16, [#allocation3], [#allocation5]
    $region5: #{tpu_custom_call.1} parent=1 // pred_fallthru
      _
    // Predicated region
    $region6: #{tpu_custom_call.1} parent=1 // pred_check
      _
    $region7: #{tpu_custom_call.1} parent=1 // pred_check_branch
      %22 = sbr.rel (0) target = $region9
    $region8: #{tpu_custom_call.1} parent=1 // pred_region
      _
    $region9: #{tpu_custom_call.1} parent=1 // pred_fallthru
      _
    // Predicated region
    $region10: #{tpu_custom_call.1} parent=1 // pred_check
      _
    $region11: #{tpu_custom_call.1} parent=1 // pred_check_branch
      %24 = sbr.rel (0) target = $region13
    $region12: #{tpu_custom_call.1} parent=1 // pred_region
      _
    $region13: #{tpu_custom_call.1} parent=1 // pred_fallthru
      _
    // Predicated region
    $region14: #{tpu_custom_call.1} parent=1 // pred_check
      _
    $region15: #{tpu_custom_call.1} parent=1 // pred_check_branch
      %26 = sbr.rel (0) target = $region17
    $region16: #{tpu_custom_call.1} parent=1 // pred_region
      %27 = dma.done [#allocation5], 16
    $region17: #{tpu_custom_call.1} parent=1 // pred_fallthru
      _
    %28 = sfence
    %v29 = vld [vmem:[%s2] sm:$0x1]
    %s30 = sld [smem:[#allocation3]]
    %s31 = sld [smem:[#allocation3 + $0x1]]
    %s32 = sld [smem:[#allocation2]]
    %33 = vrot.lane.b32.xlu0 %v29, 127
    %v34 = vpop.permute.xlu0 %33
    %v35 = vstv %s30
    %v36 = vmul.f32 %v29, %v35
    %v37 = vstv %s31
    %v38 = vmul.f32 %v34, %v37
    %v39 = vadd.f32 %v36, %v38
    %v40 = vstv %s32
    %v41 = vadd.f32 %v39, %v40
    %v42 = vmul.f32 %v41, 0.5
    %v43 = vtanh.pop %v42
    %v44 = vmul.f32 %v43, 0.5
    %v45 = vadd.f32 %v44, 0.5
    %46 = vst [vmem:[#allocation6] sm:$0x1] %v45
    // Predicated region
    $region18: #{tpu_custom_call.1} parent=1 // pred_check
      _
    $region19: #{tpu_custom_call.1} parent=1 // pred_check_branch
      %48 = sbr.rel (0) target = $region21
    $region20: #{tpu_custom_call.1} parent=1 // pred_region
      %s50 = ssub.s32 16, 16
      %51 = vsyncadd [#allocation4], %s50
      %s53 = sshll.u32 [#allocation6], 4
      %s54 = int_to_ptr.vmem [resolvable:$true] %s53
      %56 = dma.vmem_to_hbm [thread:$0]  %s54, 16, %s3, [#allocation4]
    $region21: #{tpu_custom_call.1} parent=1 // pred_fallthru
      _
    // Predicated region
    $region22: #{tpu_custom_call.1} parent=1 // pred_check
      _
    $region23: #{tpu_custom_call.1} parent=1 // pred_check_branch
      %58 = sbr.rel (0) target = $region25
    $region24: #{tpu_custom_call.1} parent=1 // pred_region
      %59 = dma.done [#allocation4], 16
    $region25: #{tpu_custom_call.1} parent=1 // pred_fallthru
      _
    %60 = vsyncpa [#allocation4], 1
    %61 = vsyncpa [#allocation5], 1

</llo_original>
